<compile_context>
chip_gen: v6e
topology: v6e:2x2x1
jax: 0.10.0
libtpu: 0.0.40
codegen_flags: <defaults>
</compile_context>

<pallas_src>
import math
import functools

import jax
import jax.numpy as jnp
from jax.experimental import pallas as pl
from jax.experimental.pallas import tpu as pltpu


# ----------------------------- kernels ------------------------------------


def _pe_add_kernel(x_ref, pe_ref, o_ref, *, batch_first):
    # x_ref: [TS, B, D] (seq-first) or [B, TS, D] (batch_first)
    # pe_ref: [TS, D] compact table -> broadcast inside the kernel.
    pe = pe_ref[...]
    pe = pe[None, :, :] if batch_first else pe[:, None, :]
    o_ref[...] = (x_ref[...] + pe).astype(o_ref.dtype)


def _hash32(x):
    # murmur3 fmix32-style avalanche on uint32 vectors (pure VPU ops; portable
    # to interpret mode, unlike the TPU hardware PRNG primitives).
    x = x ^ (x >> 16)
    x = x * jnp.uint32(0x7FEB352D)
    x = x ^ (x >> 15)
    x = x * jnp.uint32(0x846CA68B)
    x = x ^ (x >> 16)
    return x


def _pe_add_dropout_kernel(seed_ref, x_ref, pe_ref, o_ref, *,
                           rate, batch_first, seq_len):
    # Training-mode dropout fused with the positional add.
    i = pl.program_id(0)
    pe = pe_ref[...].astype(jnp.float32)
    pe = pe[None, :, :] if batch_first else pe[:, None, :]
    y = x_ref[...].astype(jnp.float32) + pe

    shape = x_ref.shape
    if batch_first:
        _, TS, D = shape
        b_idx = jax.lax.broadcasted_iota(jnp.int32, shape, 0)
        s_idx = jax.lax.broadcasted_iota(jnp.int32, shape, 1) + i * TS
        d_idx = jax.lax.broadcasted_iota(jnp.int32, shape, 2)
        gid = (b_idx * seq_len + s_idx) * D + d_idx
    else:
        TS, B, D = shape
        s_idx = jax.lax.broadcasted_iota(jnp.int32, shape, 0) + i * TS
        b_idx = jax.lax.broadcasted_iota(jnp.int32, shape, 1)
        d_idx = jax.lax.broadcasted_iota(jnp.int32, shape, 2)
        gid = (s_idx * B + b_idx) * D + d_idx

    # Hash-mix the seed (golden-ratio constant) so tiles / layers / steps
    # draw decorrelated masks; unique global id per element across tiles.
    seed = seed_ref[0].astype(jnp.uint32) * jnp.uint32(0x9E3779B1)
    bits = _hash32(gid.astype(jnp.uint32) + seed)

    # Integer-threshold compare (no u32->f32 convert); scale kept in f32 to
    # avoid bf16 rounding bias, cast only the final result.
    threshold = jnp.uint32(min(int(rate * 4294967296.0), 4294967295))
    scale = jnp.float32(1.0 / (1.0 - rate))
    o_ref[...] = jnp.where(bits >= threshold, y * scale, 0.0).astype(o_ref.dtype)


# ----------------------------- helpers -------------------------------------


@functools.lru_cache(maxsize=None)
def _vmem_limit_bytes() -> int:
    """Generation-aware VMEM cap (64 MiB on 128-MiB parts, <=48 MiB on v7x)."""
    phys = 64 << 20
    try:
        info = pltpu.get_tpu_info()
        phys = int(getattr(info, "vmem_capacity_bytes", phys)) or phys
    except Exception:
        pass
    if phys >= (128 << 20):           # v5e / v6e
        return 64 << 20
    return min(48 << 20, (phys * 3) // 4)   # v7x (64 MiB physical) / unknown


def _pick_tile_rows(seq_len: int, row_bytes: int, sublane: int,
                    budget_bytes: int) -> int:
    """Seq rows per grid step: full length, or a sublane multiple in budget."""
    if seq_len <= sublane:
        return seq_len
    ts = budget_bytes // max(row_bytes, 1)
    ts -= ts % sublane
    if ts >= seq_len:
        return seq_len
    return max(sublane, int(ts))


# ----------------------------- module -------------------------------------


class PositionalEncoding:
    """JAX/Pallas equivalent of the PyTorch PositionalEncoding module."""

    def __init__(self, d_model: int, dropout: float = 0.1, max_len: int = 5000,
                 batch_first: bool = False):
        assert d_model % 2 == 0, "d_model must be even (same limit as torch original)"
        assert 0.0 <= dropout < 1.0, "dropout rate must be in [0, 1)"
        self.d_model = d_model
        self.dropout_rate = float(dropout)
        self.max_len = max_len
        self.batch_first = batch_first

        # Same math as the PyTorch __init__, stored as a compact 2D table.
        position = jnp.arange(max_len, dtype=jnp.float32)[:, None]
        div_term = jnp.exp(jnp.arange(0, d_model, 2, dtype=jnp.float32)
                           * (-math.log(10000.0) / d_model))
        pe = jnp.zeros((max_len, d_model), dtype=jnp.float32)
        pe = pe.at[:, 0::2].set(jnp.sin(position * div_term))
        pe = pe.at[:, 1::2].set(jnp.cos(position * div_term))
        self.pe = pe                                          # [max_len, d_model]
        self._pe_cache = {jnp.dtype(jnp.float32): pe}         # per-dtype cache

    def _pe_for(self, dtype):
        dt = jnp.dtype(dtype)
        cached = self._pe_cache.get(dt)
        if cached is None:
            cached = self.pe.astype(dt)
            self._pe_cache[dt] = cached
        return cached

    def __call__(self, x, *, training: bool = False, seed: int = 0,
                 tile_rows=None, donate_x: bool = False):
        if self.batch_first:
            B, S, D = x.shape
        else:
            S, B, D = x.shape
        assert D == self.d_model, "last dim must equal d_model"
        assert S <= self.max_len, "sequence longer than max_len"

        itemsize = jnp.dtype(x.dtype).itemsize
        sublane = max(8, 32 // itemsize)          # 8 f32 / 16 bf16 / 32 int8
        lane_pad_d = -(-D // 128) * 128           # D padded to 128 lanes in VMEM
        # seq-first blocks have trailing dims (B, D) -> B pads to a sublane multiple.
        b_eff = B if self.batch_first else -(-B // sublane) * sublane
        # Live VMEM per seq row: double-buffered x in + out (4 bufs) + pe (2 bufs).
        row_bytes = (4 * b_eff + 2) * lane_pad_d * itemsize

        vmem_limit = _vmem_limit_bytes()
        budget = (vmem_limit * 5) // 8
        if tile_rows is None:
            TS = _pick_tile_rows(S, row_bytes, sublane, budget)
        else:
            TS = min(int(tile_rows), S)
        assert TS == S or TS % sublane == 0, \
            "tile_rows must be S or a multiple of the dtype sublane count"
        grid = (pl.cdiv(S, TS),)

        pe2d = self._pe_for(x.dtype)[:S]          # [S, D], cached per dtype

        def pe_map(i, *_):                        # works with/without prefetch
            return (i, 0)

        if self.batch_first:
            x_block = (B, TS, D)

            def x_map(i, *_):
                return (0, i, 0)
        else:
            x_block = (TS, B, D)

            def x_map(i, *_):
                return (i, 0, 0)

        compiler_params = pltpu.CompilerParams(
            # "parallel" lets independent seq tiles shard across v7x's 2 TCs;
            # if xprof shows single-core residency there, switch this axis to
            # CORE_PARALLEL or split S explicitly per core. If DMA turnaround
            # is exposed on v7x, sweep pipeline_mode=pl.Buffered(3) on x/out.
            dimension_semantics=("parallel",),
            vmem_limit_bytes=vmem_limit,
        )

        if not training:
            kern = functools.partial(_pe_add_kernel, batch_first=self.batch_first)
            out = pl.pallas_call(
                kern,
                out_shape=jax.ShapeDtypeStruct(x.shape, x.dtype),
                grid=grid,
                in_specs=[
                    pl.BlockSpec(x_block, x_map),
                    pl.BlockSpec((TS, D), pe_map),
                ],
                out_specs=pl.BlockSpec(x_block, x_map),
                compiler_params=compiler_params,
                input_output_aliases=({0: 0} if donate_x else {}),
            )(x, pe2d)
        else:
            seed_arr = jnp.asarray([seed], dtype=jnp.int32)
            kern = functools.partial(_pe_add_dropout_kernel,
                                     rate=self.dropout_rate,
                                     batch_first=self.batch_first,
                                     seq_len=S)
            out = pl.pallas_call(
                kern,
                out_shape=jax.ShapeDtypeStruct(x.shape, x.dtype),
                grid_spec=pltpu.PrefetchScalarGridSpec(
                    num_scalar_prefetch=1,
                    grid=grid,
                    in_specs=[
                        pl.BlockSpec(x_block, x_map),
                        pl.BlockSpec((TS, D), pe_map),
                    ],
                    out_specs=pl.BlockSpec(x_block, x_map),
                ),
                compiler_params=compiler_params,
                input_output_aliases=({1: 0} if donate_x else {}),
            )(seed_arr, x, pe2d)

        return out


# ----------------------------- test ----------------------------------------


if __name__ == "__main__":
    key = jax.random.PRNGKey(0)

    # 1) small seq-first case, eval mode.
    S, B, D = 8, 2, 32
    x = jax.random.normal(key, (S, B, D), dtype=jnp.float32)
    mod = PositionalEncoding(d_model=D, dropout=0.1, max_len=64, batch_first=False)
    out = jax.block_until_ready(mod(x))
    ref = x + mod.pe[:S][:, None, :]
    assert out.shape == (S, B, D)
    assert jnp.allclose(out, ref, atol=1e-6), "seq-first mismatch"

    # 2) batch_first path (no wrapper transposes).
    mod_bf = PositionalEncoding(d_model=D, dropout=0.1, max_len=64, batch_first=True)
    x_bf = jnp.transpose(x, (1, 0, 2))                       # [B, S, D] test input
    out_bf = jax.block_until_ready(mod_bf(x_bf))
    ref_bf = jnp.transpose(ref, (1, 0, 2))
    assert jnp.allclose(out_bf, ref_bf, atol=1e-6), "batch_first mismatch"

    # 3) tiled grid (grid > 1) with lane-dense D=128, both layouts.
    S2, B2, D2 = 32, 2, 128
    k2 = jax.random.PRNGKey(1)
    x2 = jax.random.normal(k2, (S2, B2, D2), dtype=jnp.float32)
    mod2 = PositionalEncoding(d_model=D2, dropout=0.1, max_len=64, batch_first=False)
    out2 = jax.block_until_ready(mod2(x2, tile_rows=8))       # grid = (4,)
    ref2 = x2 + mod2.pe[:S2][:, None, :]
    assert jnp.allclose(out2, ref2, atol=1e-6), "tiled seq-first mismatch"

    mod2_bf = PositionalEncoding(d_model=D2, dropout=0.1, max_len=64, batch_first=True)
    x2_bf = jnp.transpose(x2, (1, 0, 2))
    out2_bf = jax.block_until_ready(mod2_bf(x2_bf, tile_rows=8))
    ref2_bf = jnp.transpose(ref2, (1, 0, 2))
    assert jnp.allclose(out2_bf, ref2_bf, atol=1e-6), "tiled batch_first mismatch"

    # 4) partial last tile (S % TS != 0) relies on masked output writes.
    S3 = 24
    x3 = jax.random.normal(jax.random.PRNGKey(2), (S3, B, D), dtype=jnp.float32)
    out3 = jax.block_until_ready(mod(x3, tile_rows=16))       # grid = (2,), last tile partial
    ref3 = x3 + mod.pe[:S3][:, None, :]
    assert jnp.allclose(out3, ref3, atol=1e-6), "partial-tile mismatch"

    # 5) training-mode dropout kernel: rate=0 must reproduce eval exactly.
    mod_p0 = PositionalEncoding(d_model=D, dropout=0.0, max_len=64, batch_first=False)
    out_p0 = jax.block_until_ready(mod_p0(x, training=True, seed=7))
    assert jnp.allclose(out_p0, ref, atol=1e-6), "dropout(rate=0) mismatch"

    # 6) training-mode dropout with rate>0: every element is 0 or y/(1-p),
    #    and the dropped fraction is roughly the requested rate.
    p = 0.1
    out_tr = jax.block_until_ready(mod(x, training=True, seed=123))
    scaled = ref / (1.0 - p)
    ok = jnp.isclose(out_tr, 0.0) | jnp.isclose(out_tr, scaled, atol=1e-5, rtol=1e-5)
    assert bool(jnp.all(ok)), "dropout values not in {0, y/(1-p)}"
    frac = float(jnp.mean((out_tr == 0.0).astype(jnp.float32)))
    assert 0.02 <= frac <= 0.3, f"dropout fraction {frac} far from rate {p}"
    assert out_tr.shape == (S, B, D)

    # 7) bf16 path exercises per-dtype pe cache and 16-row sublane rounding.
    x_b16 = x_bf.astype(jnp.bfloat16)
    out_b16 = jax.block_until_ready(mod_bf(x_b16))
    ref_b16 = x_b16 + mod_bf.pe[:S].astype(jnp.bfloat16)[None, :, :]
    assert jnp.allclose(out_b16.astype(jnp.float32),
                        ref_b16.astype(jnp.float32), atol=1e-2), "bf16 mismatch"

    print("KERNEL_OK")
</pallas_src>

<mosaic_0001>
module attributes {stable_mosaic.version = 11 : i64} {
  func.func @_pe_add_kernel(%arg0: i32, %arg1: memref<8x2x32xf32, #tpu.memory_space<vmem>>, %arg2: memref<8x32xf32, #tpu.memory_space<vmem>>, %arg3: memref<8x2x32xf32, #tpu.memory_space<vmem>>) attributes {dimension_semantics = [#tpu.dimension_semantics<parallel>], iteration_bounds = array<i64: 1>, scalar_prefetch = 0 : i64, scratch_operands = 0 : i64, tpu.core_type = #tpu.core_type<tc>, window_params = [{transform_indices = @transform_0, window_bounds = array<i64: 8, 2, 32>}, {transform_indices = @transform_1, window_bounds = array<i64: 8, 32>}, {transform_indices = @transform_2, window_bounds = array<i64: 8, 2, 32>}]} {
    %c0 = arith.constant 0 : index
    %c0_0 = arith.constant 0 : index
    %0 = vector.load %arg2[%c0, %c0_0] : memref<8x32xf32, #tpu.memory_space<vmem>>, vector<8x32xf32>
    %1 = vector.shape_cast %0 : vector<8x32xf32> to vector<8x1x32xf32>
    %c0_1 = arith.constant 0 : index
    %c0_2 = arith.constant 0 : index
    %c0_3 = arith.constant 0 : index
    %2 = vector.load %arg1[%c0_1, %c0_2, %c0_3] : memref<8x2x32xf32, #tpu.memory_space<vmem>>, vector<8x2x32xf32>
    %3 = vector.broadcast %1 : vector<8x1x32xf32> to vector<8x2x32xf32>
    %4 = arith.addf %2, %3 : vector<8x2x32xf32>
    %c0_4 = arith.constant 0 : index
    %c0_5 = arith.constant 0 : index
    %c0_6 = arith.constant 0 : index
    %5 = vector.load %arg3[%c0_4, %c0_5, %c0_6] : memref<8x2x32xf32, #tpu.memory_space<vmem>>, vector<8x2x32xf32>
    tpu.vector_store %arg3[%c0_4, %c0_5, %c0_6], %4 {strides = array<i32>} : memref<8x2x32xf32, #tpu.memory_space<vmem>>, vector<8x2x32xf32>,
    return
  }
  func.func @transform_0(%arg0: i32) -> (i32, i32, i32) {
    %c0_i32 = arith.constant 0 : i32
    %c0_i32_0 = arith.constant 0 : i32
    %c0_i32_1 = arith.constant 0 : i32
    return %arg0, %c0_i32, %c0_i32_0 : i32, i32, i32
  }
  func.func @transform_1(%arg0: i32) -> (i32, i32) {
    %c0_i32 = arith.constant 0 : i32
    %c0_i32_0 = arith.constant 0 : i32
    return %arg0, %c0_i32 : i32, i32
  }
  func.func @transform_2(%arg0: i32) -> (i32, i32, i32) {
    %c0_i32 = arith.constant 0 : i32
    %c0_i32_0 = arith.constant 0 : i32
    %c0_i32_1 = arith.constant 0 : i32
    return %arg0, %c0_i32, %c0_i32_0 : i32, i32, i32
  }
}

</mosaic_0001>

<llo_original>
// kernel: tpu_custom_call.1
$region0: #{tpu_custom_call.1}
  #allocation0 [shape = 'u32[]', space=smem, size = 0x4, offset = 0x4, fixed_abs, tag = 'smem constant byte address 0x4 - core index']
  #allocation1 [shape = 'u32[144,128]{1,0:T(1,128)}', space=vmem, size = 0x12000, scoped, tag = 'internal scratch']
  %s0 = inlined_call_operand.hbm [shape: f32[8,2,32], index: 0, kind: input, shape index: {}]
  %s1 = inlined_call_operand.hbm [shape: f32[8,32], index: 1, kind: input, shape index: {}]
  %s2 = inlined_call_operand.hbm [shape: f32[8,2,32], index: 2, kind: output, shape index: {}]
  %s3 = sld [smem:[#allocation0]]
  $region26: #{tpu_custom_call.1} parent=0
    _
  %s5 = ssub.s32 1, %s3
  %s6 = scalar_select 0, %s5, %s3
  $region1: #{tpu_custom_call.1} parent=0
    #allocation2 [shape = 'u8[8192]{0}', space=vmem, size = 0x2000, scoped, tag = 'input window, operand 0, single buffered']
    #allocation3 [shape = 's32[1]{0}', space=sflag, size = 0x4, scoped, tag = 'scoped memory for tpu_custom_call.1']
    #allocation4 [shape = 's32[1]{0}', space=sflag, size = 0x4, scoped, tag = 'scoped memory for tpu_custom_call.1']
    #allocation5 [shape = 'u8[4096]{0}', space=vmem, size = 0x1000, scoped, tag = 'input window, operand 1, single buffered']
    #allocation6 [shape = 's32[1]{0}', space=sflag, size = 0x4, scoped, tag = 'scoped memory for tpu_custom_call.1']
    #allocation7 [shape = 'u8[8192]{0}', space=vmem, size = 0x2000, scoped, tag = 'output window, operand 0, single buffered']
    %7 = vsyncpa [#allocation3], 0
    %8 = vsyncpa [#allocation6], 0
    %9 = vsyncpa [#allocation4], 0
    // Predicated region
    $region2: #{tpu_custom_call.1} parent=1 // pred_check
      _
    $region3: #{tpu_custom_call.1} parent=1 // pred_check_branch
      %11 = sbr.rel (0) target = $region5
    $region4: #{tpu_custom_call.1} parent=1 // pred_region
      %s13 = ssub.s32 256, 256
      %14 = vsyncadd [#allocation3], %s13
      %s15 = sshll.u32 [#allocation2], 4
      %s16 = int_to_ptr.vmem [resolvable:$true] %s15
      %21 = dma.hbm_to_vmem [thread:$0]  %s0, 256, %s16, [#allocation3], 32, 32, 2
    $region5: #{tpu_custom_call.1} parent=1 // pred_fallthru
      _
    // Predicated region
    $region6: #{tpu_custom_call.1} parent=1 // pred_check
      _
    $region7: #{tpu_custom_call.1} parent=1 // pred_check_branch
      %23 = sbr.rel (0) target = $region9
    $region8: #{tpu_custom_call.1} parent=1 // pred_region
      %s25 = ssub.s32 128, 128
      %26 = vsyncadd [#allocation6], %s25
      %s28 = sshll.u32 [#allocation5], 4
      %s29 = int_to_ptr.vmem [resolvable:$true] %s28
      %31 = dma.hbm_to_vmem [thread:$0]  %s1, 128, %s29, [#allocation6]
    $region9: #{tpu_custom_call.1} parent=1 // pred_fallthru
      _
    // Predicated region
    $region10: #{tpu_custom_call.1} parent=1 // pred_check
      _
    $region11: #{tpu_custom_call.1} parent=1 // pred_check_branch
      %33 = sbr.rel (0) target = $region13
    $region12: #{tpu_custom_call.1} parent=1 // pred_region
      %34 = dma.done [#allocation3], 256
    $region13: #{tpu_custom_call.1} parent=1 // pred_fallthru
      _
    // Predicated region
    $region14: #{tpu_custom_call.1} parent=1 // pred_check
      _
    $region15: #{tpu_custom_call.1} parent=1 // pred_check_branch
      %36 = sbr.rel (0) target = $region17
    $region16: #{tpu_custom_call.1} parent=1 // pred_region
      %37 = dma.done [#allocation6], 128
    $region17: #{tpu_custom_call.1} parent=1 // pred_fallthru
      _
    %v38 = vld [vmem:[#allocation5] sm:$0xff]
    %v40 = vcombine.high %v38, %v38
    %v42 = vunpack.c.l.s4 1966171168
    %v43 = vunpack.c.0.s8 %v42
    %v44 = vlaneseq
    %v45 = vshrl.u32 %v44, 7
    %v46 = vsub.s32 %v43, %v45
    %v47 = vrot.slane %v38, %v46
    %v49 = vunpack.c.l.s4 1966171168
    %v50 = vunpack.c.0.s8 %v49
    %v51 = vlaneseq
    %v52 = vshrl.u32 %v51, 7
    %v53 = vsub.s32 %v50, %v52
    %v54 = vrot.slane %v40, %v53
    %v55 = vcombine.high %v47, %v47
    %v56 = vcombine.high %v54, %v54
    %v58 = vunpack.c.l.s4 1966171168
    %v59 = vunpack.c.0.s8 %v58
    %v60 = vlaneseq
    %v61 = vshrl.u32 %v60, 7
    %v62 = vsub.s32 %v59, %v61
    %v63 = vrot.slane %v47, %v62
    %v65 = vunpack.c.l.s4 1966171168
    %v66 = vunpack.c.0.s8 %v65
    %v67 = vlaneseq
    %v68 = vshrl.u32 %v67, 7
    %v69 = vsub.s32 %v66, %v68
    %v70 = vrot.slane %v54, %v69
    %v72 = vunpack.c.l.s4 1966171168
    %v73 = vunpack.c.0.s8 %v72
    %v74 = vlaneseq
    %v75 = vshrl.u32 %v74, 7
    %v76 = vsub.s32 %v73, %v75
    %v77 = vrot.slane %v55, %v76
    %v79 = vunpack.c.l.s4 1966171168
    %v80 = vunpack.c.0.s8 %v79
    %v81 = vlaneseq
    %v82 = vshrl.u32 %v81, 7
    %v83 = vsub.s32 %v80, %v82
    %v84 = vrot.slane %v56, %v83
    %v85 = vcombine.high %v63, %v63
    %v86 = vcombine.high %v70, %v70
    %v87 = vcombine.high %v77, %v77
    %v88 = vcombine.high %v84, %v84
    %v89 = vld [vmem:[#allocation2] sm:$0x3]
    %v90 = vld [vmem:[#allocation2 + $0x2] sm:$0x3]
    %v91 = vld [vmem:[#allocation2 + $0x4] sm:$0x3]
    %v92 = vld [vmem:[#allocation2 + $0x6] sm:$0x3]
    %v93 = vld [vmem:[#allocation2 + $0x8] sm:$0x3]
    %v94 = vld [vmem:[#allocation2 + $0xa] sm:$0x3]
    %v95 = vld [vmem:[#allocation2 + $0xc] sm:$0x3]
    %v96 = vld [vmem:[#allocation2 + $0xe] sm:$0x3]
    %v97 = vlaneseq
    %v98 = vshrl.u32 %v97, 7
    %v99 = vsub.s32 0, %v98
    %v100 = vrot.slane %v63, %v99
    %v101 = vlaneseq
    %v102 = vshrl.u32 %v101, 7
    %v103 = vsub.s32 0, %v102
    %v104 = vrot.slane %v77, %v103
    %v105 = vlaneseq
    %v106 = vshrl.u32 %v105, 7
    %v107 = vsub.s32 0, %v106
    %v108 = vrot.slane %v85, %v107
    %v109 = vlaneseq
    %v110 = vshrl.u32 %v109, 7
    %v111 = vsub.s32 0, %v110
    %v112 = vrot.slane %v87, %v111
    %v113 = vlaneseq
    %v114 = vshrl.u32 %v113, 7
    %v115 = vsub.s32 0, %v114
    %v116 = vrot.slane %v70, %v115
    %v117 = vlaneseq
    %v118 = vshrl.u32 %v117, 7
    %v119 = vsub.s32 0, %v118
    %v120 = vrot.slane %v84, %v119
    %v121 = vlaneseq
    %v122 = vshrl.u32 %v121, 7
    %v123 = vsub.s32 0, %v122
    %v124 = vrot.slane %v86, %v123
    %v125 = vlaneseq
    %v126 = vshrl.u32 %v125, 7
    %v127 = vsub.s32 0, %v126
    %v128 = vrot.slane %v88, %v127
    %v137 = vadd.f32 %v89, %v100
    %v138 = vadd.f32 %v90, %v104
    %v139 = vadd.f32 %v91, %v108
    %v140 = vadd.f32 %v92, %v112
    %v141 = vadd.f32 %v93, %v116
    %v142 = vadd.f32 %v94, %v120
    %v143 = vadd.f32 %v95, %v124
    %v144 = vadd.f32 %v96, %v128
    %vm145 = vcmask 254976
    %146 = vst.msk [vmem:[#allocation7] sm:$0x3] %vm145, %v137
    %147 = vst.msk [vmem:[#allocation7 + $0x2] sm:$0x3] %vm145, %v138
    %148 = vst.msk [vmem:[#allocation7 + $0x4] sm:$0x3] %vm145, %v139
    %149 = vst.msk [vmem:[#allocation7 + $0x6] sm:$0x3] %vm145, %v140
    %150 = vst.msk [vmem:[#allocation7 + $0x8] sm:$0x3] %vm145, %v141
    %151 = vst.msk [vmem:[#allocation7 + $0xa] sm:$0x3] %vm145, %v142
    %152 = vst.msk [vmem:[#allocation7 + $0xc] sm:$0x3] %vm145, %v143
    %153 = vst.msk [vmem:[#allocation7 + $0xe] sm:$0x3] %vm145, %v144
    // Predicated region
    $region18: #{tpu_custom_call.1} parent=1 // pred_check
      _
    $region19: #{tpu_custom_call.1} parent=1 // pred_check_branch
      %155 = sbr.rel (0) target = $region21
    $region20: #{tpu_custom_call.1} parent=1 // pred_region
      %s157 = ssub.s32 256, 256
      %158 = vsyncadd [#allocation4], %s157
      %s159 = sshll.u32 [#allocation7], 4
      %s160 = int_to_ptr.vmem [resolvable:$true] %s159
      %165 = dma.vmem_to_hbm [thread:$0]  %s160, 256, %s2, [#allocation4], 32, 32, 2
    $region21: #{tpu_custom_call.1} parent=1 // pred_fallthru
      _
    // Predicated region
    $region22: #{tpu_custom_call.1} parent=1 // pred_check
      _
    $region23: #{tpu_custom_call.1} parent=1 // pred_check_branch
      %167 = sbr.rel (0) target = $region25
    $region24: #{tpu_custom_call.1} parent=1 // pred_region
      %168 = dma.done [#allocation4], 256
    $region25: #{tpu_custom_call.1} parent=1 // pred_fallthru
      _
    %169 = vsyncpa [#allocation3], 1
    %170 = vsyncpa [#allocation6], 1
    %171 = vsyncpa [#allocation4], 1

</llo_original>
